<compile_context>
chip_gen: v7x
topology: tpu7x:2x2x1
jax: 0.10.0
libtpu: 0.0.40
codegen_flags: <defaults>
</compile_context>

<pallas_src>
import math

import jax
import jax.numpy as jnp
from jax.experimental import pallas as pl
from jax.experimental.pallas import tpu as pltpu


def make_positional_encoding(d_model: int, max_len: int = 5000) -> jnp.ndarray:
    """Deterministic pe buffer identical to the torch __init__ (fp32)."""
    position = jnp.arange(max_len, dtype=jnp.float32)[:, None]               # [max_len, 1]
    div_term = jnp.exp(
        jnp.arange(0, d_model, 2, dtype=jnp.float32) * (-math.log(10000.0) / d_model)
    )                                                                        # [d_model/2]
    angles = position * div_term                                             # [max_len, d_model/2]
    pe = jnp.zeros((max_len, 1, d_model), dtype=jnp.float32)
    pe = pe.at[:, 0, 0::2].set(jnp.sin(angles))
    pe = pe.at[:, 0, 1::2].set(jnp.cos(angles))
    return pe


def _add_pe_kernel(x_ref, pe_ref, o_ref):
    # Works for both layouts:
    #   aligned path : x/o [TS, B, D], pe [TS, 1, D]  (broadcast over batch)
    #   flat path    : x/o [TS, B*D],  pe [TS, B*D]   (same-shape lane-dense add)
    o_ref[...] = x_ref[...] + pe_ref[...]


def _choose_seq_tile(seq_len: int, row_bytes: int, target_bytes: int) -> int:
    """Pick a seq-tile size: ~target_bytes per x tile, multiple of 8 sublanes."""
    ts = max(1, target_bytes // max(row_bytes, 1))
    if ts >= seq_len:
        return seq_len
    ts = max(8, (ts // 8) * 8)     # keep the sublane (second-minor) dim 8-aligned
    return min(ts, seq_len)


def positional_encoding_forward(
    x: jnp.ndarray, pe: jnp.ndarray, *, target_tile_bytes: int = 1 << 20
) -> jnp.ndarray:
    """x: [seq_len, batch, d_model]; pe: [max_len, 1, d_model]."""
    seq_len, batch, d_model = x.shape
    # Cast pe to x.dtype in the wrapper (avoids mixed-dtype promote + halves pe
    # HBM read bytes when x is bf16).
    pe_rows = pe[:seq_len, 0, :].astype(x.dtype)                     # [S, D]

    itemsize = jnp.dtype(x.dtype).itemsize
    row_bytes = batch * d_model * itemsize
    ts = _choose_seq_tile(seq_len, row_bytes, target_tile_bytes)
    grid = (pl.cdiv(seq_len, ts),)
    cparams = pltpu.CompilerParams(dimension_semantics=("parallel",))

    if d_model % 128 == 0:
        # Already lane-dense: keep [S, B, D]; pe fetched once per seq tile as a
        # tiny [TS, 1, D] block and broadcast-added over batch inside the kernel.
        return pl.pallas_call(
            _add_pe_kernel,
            out_shape=jax.ShapeDtypeStruct((seq_len, batch, d_model), x.dtype),
            grid_spec=pltpu.PrefetchScalarGridSpec(
                num_scalar_prefetch=0,
                grid=grid,
                in_specs=[
                    pl.BlockSpec((ts, batch, d_model), lambda i: (i, 0, 0)),
                    pl.BlockSpec((ts, 1, d_model), lambda i: (i, 0, 0)),
                ],
                out_specs=pl.BlockSpec((ts, batch, d_model), lambda i: (i, 0, 0)),
            ),
            compiler_params=cparams,
        )(x, pe_rows[:, None, :])

    # Small / unaligned d_model (e.g. demo D=32): flatten to [S, B*D] so the
    # kernel's trailing dim is B*D lanes wide (unmasked stores) instead of a
    # (B, D) tile that wastes most of each vreg. pe is broadcast over batch in
    # the wrapper so the kernel is a same-shape add.
    x_2d = x.reshape(seq_len, batch * d_model)
    pe_2d = jnp.broadcast_to(
        pe_rows[:, None, :], (seq_len, batch, d_model)
    ).reshape(seq_len, batch * d_model)

    out_2d = pl.pallas_call(
        _add_pe_kernel,
        out_shape=jax.ShapeDtypeStruct((seq_len, batch * d_model), x.dtype),
        grid_spec=pltpu.PrefetchScalarGridSpec(
            num_scalar_prefetch=0,
            grid=grid,
            in_specs=[
                pl.BlockSpec((ts, batch * d_model), lambda i: (i, 0)),
                pl.BlockSpec((ts, batch * d_model), lambda i: (i, 0)),
            ],
            out_specs=pl.BlockSpec((ts, batch * d_model), lambda i: (i, 0)),
        ),
        compiler_params=cparams,
    )(x_2d, pe_2d)
    return out_2d.reshape(seq_len, batch, d_model)


if __name__ == "__main__":
    key = jax.random.PRNGKey(0)

    # Test 1: demo shape from the module (d_model=32 -> lane-dense 2-D path).
    seq_len, batch, d_model = 8, 2, 32
    pe = make_positional_encoding(d_model, max_len=64)
    x = jax.random.normal(key, (seq_len, batch, d_model), dtype=jnp.float32)
    out = jax.block_until_ready(positional_encoding_forward(x, pe))
    ref = x + pe[:seq_len]
    assert out.shape == (seq_len, batch, d_model)
    assert jnp.allclose(out, ref, atol=1e-6), "mismatch vs reference (flat path)"

    # Test 2: 128-aligned d_model (3-D path with in-kernel broadcast), with a
    # forced small tile so the grid actually pipelines (TS=8, grid=3, last tile
    # partial: seq_len=20).
    seq_len2, batch2, d_model2 = 20, 2, 128
    pe2 = make_positional_encoding(d_model2, max_len=32)
    x2 = jax.random.normal(
        jax.random.fold_in(key, 1), (seq_len2, batch2, d_model2), dtype=jnp.float32
    )
    out2 = jax.block_until_ready(
        positional_encoding_forward(
            x2, pe2, target_tile_bytes=8 * batch2 * d_model2 * 4
        )
    )
    ref2 = x2 + pe2[:seq_len2]
    assert out2.shape == (seq_len2, batch2, d_model2)
    assert jnp.allclose(out2, ref2, atol=1e-6), "mismatch vs reference (3-D path)"

    print("KERNEL_OK")
</pallas_src>

<mosaic_0001>
module attributes {stable_mosaic.version = 11 : i64} {
  func.func @_add_pe_kernel(%arg0: i32, %arg1: memref<8x64xf32, #tpu.memory_space<vmem>>, %arg2: memref<8x64xf32, #tpu.memory_space<vmem>>, %arg3: memref<8x64xf32, #tpu.memory_space<vmem>>) attributes {dimension_semantics = [#tpu.dimension_semantics<parallel>], iteration_bounds = array<i64: 1>, scalar_prefetch = 0 : i64, scratch_operands = 0 : i64, tpu.core_type = #tpu.core_type<tc>, window_params = [{transform_indices = @transform_0, window_bounds = array<i64: 8, 64>}, {transform_indices = @transform_1, window_bounds = array<i64: 8, 64>}, {transform_indices = @transform_2, window_bounds = array<i64: 8, 64>}]} {
    %c0 = arith.constant 0 : index
    %c0_0 = arith.constant 0 : index
    %0 = vector.load %arg1[%c0, %c0_0] : memref<8x64xf32, #tpu.memory_space<vmem>>, vector<8x64xf32>
    %c0_1 = arith.constant 0 : index
    %c0_2 = arith.constant 0 : index
    %1 = vector.load %arg2[%c0_1, %c0_2] : memref<8x64xf32, #tpu.memory_space<vmem>>, vector<8x64xf32>
    %2 = arith.addf %0, %1 : vector<8x64xf32>
    %c0_3 = arith.constant 0 : index
    %c0_4 = arith.constant 0 : index
    %3 = vector.load %arg3[%c0_3, %c0_4] : memref<8x64xf32, #tpu.memory_space<vmem>>, vector<8x64xf32>
    tpu.vector_store %arg3[%c0_3, %c0_4], %2 {strides = array<i32>} : memref<8x64xf32, #tpu.memory_space<vmem>>, vector<8x64xf32>,
    return
  }
  func.func @transform_0(%arg0: i32) -> (i32, i32) {
    %c0_i32 = arith.constant 0 : i32
    %c0_i32_0 = arith.constant 0 : i32
    return %arg0, %c0_i32 : i32, i32
  }
  func.func @transform_1(%arg0: i32) -> (i32, i32) {
    %c0_i32 = arith.constant 0 : i32
    %c0_i32_0 = arith.constant 0 : i32
    return %arg0, %c0_i32 : i32, i32
  }
  func.func @transform_2(%arg0: i32) -> (i32, i32) {
    %c0_i32 = arith.constant 0 : i32
    %c0_i32_0 = arith.constant 0 : i32
    return %arg0, %c0_i32 : i32, i32
  }
}

</mosaic_0001>

<llo_original>
// kernel: tpu_custom_call.1
$region0: #{tpu_custom_call.1}
  #allocation0 [shape = 'u32[]', space=smem, size = 0x4, offset = 0x4, fixed_abs, tag = 'smem constant byte address 0x4 - core index']
  #allocation1 [shape = 'u32[144,128]{1,0:T(1,128)}', space=vmem, size = 0x12000, scoped, tag = 'internal scratch']
  %s0 = inlined_call_operand.hbm [shape: f32[8,64], index: 0, kind: input, shape index: {}]
  %s1 = inlined_call_operand.hbm [shape: f32[8,64], index: 1, kind: input, shape index: {}]
  %s2 = inlined_call_operand.hbm [shape: f32[8,64], index: 2, kind: output, shape index: {}]
  %s3 = sld [smem:[#allocation0]]
  $region26: #{tpu_custom_call.1} parent=0
    _
  %s5 = ssub.s32 1, %s3
  %s6 = scalar_select 0, %s5, %s3
  $region1: #{tpu_custom_call.1} parent=0
    #allocation2 [shape = 'u8[4096]{0}', space=vmem, size = 0x1000, scoped, tag = 'input window, operand 0, single buffered']
    #allocation3 [shape = 's32[1]{0}', space=sflag, size = 0x4, scoped, tag = 'scoped memory for tpu_custom_call.1']
    #allocation4 [shape = 's32[1]{0}', space=sflag, size = 0x4, scoped, tag = 'scoped memory for tpu_custom_call.1']
    #allocation5 [shape = 'u8[4096]{0}', space=vmem, size = 0x1000, scoped, tag = 'input window, operand 1, single buffered']
    #allocation6 [shape = 's32[1]{0}', space=sflag, size = 0x4, scoped, tag = 'scoped memory for tpu_custom_call.1']
    #allocation7 [shape = 'u8[4096]{0}', space=vmem, size = 0x1000, scoped, tag = 'output window, operand 0, single buffered']
    %7 = vsyncpa [#allocation3], 0
    %8 = vsyncpa [#allocation6], 0
    %9 = vsyncpa [#allocation4], 0
    // Predicated region
    $region2: #{tpu_custom_call.1} parent=1 // pred_check
      _
    $region3: #{tpu_custom_call.1} parent=1 // pred_check_branch
      %11 = sbr.rel (0) target = $region5
    $region4: #{tpu_custom_call.1} parent=1 // pred_region
      %s13 = ssub.s32 128, 128
      %14 = vsyncadd [#allocation3], %s13
      %s16 = sshll.u32 [#allocation2], 4
      %s17 = int_to_ptr.vmem [resolvable:$true] %s16
      %19 = dma.hbm_to_vmem [thread:$0]  %s0, 128, %s17, [#allocation3]
    $region5: #{tpu_custom_call.1} parent=1 // pred_fallthru
      _
    // Predicated region
    $region6: #{tpu_custom_call.1} parent=1 // pred_check
      _
    $region7: #{tpu_custom_call.1} parent=1 // pred_check_branch
      %21 = sbr.rel (0) target = $region9
    $region8: #{tpu_custom_call.1} parent=1 // pred_region
      %s23 = ssub.s32 128, 128
      %24 = vsyncadd [#allocation6], %s23
      %s26 = sshll.u32 [#allocation5], 4
      %s27 = int_to_ptr.vmem [resolvable:$true] %s26
      %29 = dma.hbm_to_vmem [thread:$0]  %s1, 128, %s27, [#allocation6]
    $region9: #{tpu_custom_call.1} parent=1 // pred_fallthru
      _
    // Predicated region
    $region10: #{tpu_custom_call.1} parent=1 // pred_check
      _
    $region11: #{tpu_custom_call.1} parent=1 // pred_check_branch
      %31 = sbr.rel (0) target = $region13
    $region12: #{tpu_custom_call.1} parent=1 // pred_region
      %32 = dma.done [#allocation3], 128
    $region13: #{tpu_custom_call.1} parent=1 // pred_fallthru
      _
    // Predicated region
    $region14: #{tpu_custom_call.1} parent=1 // pred_check
      _
    $region15: #{tpu_custom_call.1} parent=1 // pred_check_branch
      %34 = sbr.rel (0) target = $region17
    $region16: #{tpu_custom_call.1} parent=1 // pred_region
      %35 = dma.done [#allocation6], 128
    $region17: #{tpu_custom_call.1} parent=1 // pred_fallthru
      _
    %v36 = vld [vmem:[#allocation2] sm:$0xff]
    %v37 = vld [vmem:[#allocation5] sm:$0xff]
    %v38 = vadd.f32 %v36, %v37
    %vm39 = vcmask 523264
    %40 = vst.msk [vmem:[#allocation7] sm:$0xff] %vm39, %v38
    // Predicated region
    $region18: #{tpu_custom_call.1} parent=1 // pred_check
      _
    $region19: #{tpu_custom_call.1} parent=1 // pred_check_branch
      %42 = sbr.rel (0) target = $region21
    $region20: #{tpu_custom_call.1} parent=1 // pred_region
      %s44 = ssub.s32 128, 128
      %45 = vsyncadd [#allocation4], %s44
      %s47 = sshll.u32 [#allocation7], 4
      %s48 = int_to_ptr.vmem [resolvable:$true] %s47
      %50 = dma.vmem_to_hbm [thread:$0]  %s48, 128, %s2, [#allocation4]
    $region21: #{tpu_custom_call.1} parent=1 // pred_fallthru
      _
    // Predicated region
    $region22: #{tpu_custom_call.1} parent=1 // pred_check
      _
    $region23: #{tpu_custom_call.1} parent=1 // pred_check_branch
      %52 = sbr.rel (0) target = $region25
    $region24: #{tpu_custom_call.1} parent=1 // pred_region
      %53 = dma.done [#allocation4], 128
    $region25: #{tpu_custom_call.1} parent=1 // pred_fallthru
      _
    %54 = vsyncpa [#allocation3], 1
    %55 = vsyncpa [#allocation6], 1
    %56 = vsyncpa [#allocation4], 1

</llo_original>
